<compile_context>
chip_gen: v7x
topology: tpu7x:2x2x1
jax: 0.10.0
libtpu: 0.0.40
codegen_flags: <defaults>
</compile_context>

<pallas_src>
import functools

import jax
import jax.numpy as jnp
import numpy as np
from jax import lax
from jax.experimental import pallas as pl
from jax.experimental.pallas import tpu as pltpu

LANE = 128                 # lane width (last dim of every tile)
CHUNK = 512                # rows of in-kernel compute per fori_loop iteration
SMALL_INPUT_BYTES = 1 << 20  # below this, skip Pallas and use plain jnp

# native sublane packing per dtype itemsize (f32 -> 8, bf16/f16 -> 16, i8 -> 32)
_SUBLANE = {4: 8, 2: 16, 1: 32}


def _chip_config():
    """(max tile rows, prefer >=2 grid steps) derived from the TPU generation."""
    try:
        kind = jax.devices()[0].device_kind.lower()
    except Exception:  # pragma: no cover - defensive
        kind = ""
    if "v5e" in kind or "v5 lite" in kind or "v5lite" in kind:
        return 1024, False          # v5e: 16 MiB default scoped VMEM, 1 TC
    return 4096, ("v7" in kind)     # v6e/v7x/other: big tiles; v7x has 2 TCs


def _depth_loss_kernel(rows_p, chunk, n_chunks, need_mask,
                       instance_only, has_fine, *refs):
    """One grid step over a (tm, 128) window.

    Writes one fused (1, 8, 128) f32 block of lane-resolved partial sums:
      row 0: sum of (coarse err)^2 [*weight] over selected rays
      row 1: same for fine (zero when no fine head)
      row 2: selected-ray count
      row 3: positive-target count
      rows 4..7: zero padding (full-sublane unmasked store)
    """
    n_in = 3 + int(has_fine) + (2 if instance_only else 0)
    in_refs = refs[:n_in]
    out_ref = refs[n_in]

    it = iter(in_refs)
    dc_ref = next(it)
    df_ref = next(it) if has_fine else None
    tgt_ref = next(it)
    vm_ref = next(it)
    im_ref = next(it) if instance_only else None
    iw_ref = next(it) if instance_only else None

    i = pl.program_id(0)
    tm = tgt_ref.shape[0]
    block_base = i * tm

    def chunk_update(c, carry):
        acc_c, acc_f, acc_cnt, acc_pos = carry
        start = c * chunk
        if not isinstance(start, int):
            start = pl.multiple_of(start, chunk)
        sl = pl.ds(start, chunk)

        t = tgt_ref[sl, :].astype(jnp.float32)
        pos = t > 0.0
        if need_mask:
            # Only the (possibly garbage-filled) tail past rows_p must be cut;
            # use AND with a boolean (select, never multiply) so NaN garbage
            # cannot leak into the sums.
            row = lax.broadcasted_iota(jnp.int32, (chunk, LANE), 0)
            pos = pos & ((row + block_base + c * chunk) < rows_p)
        sel = pos & (vm_ref[sl, :] != 0)          # works for f32 or int8 masks
        if instance_only:
            sel = sel & (im_ref[sl, :] != 0)
            w = iw_ref[sl, :].astype(jnp.float32)
        else:
            w = None

        def masked_rowsum(mask, val):
            return jnp.sum(jnp.where(mask, val, 0.0), axis=0, keepdims=True)

        e = dc_ref[sl, :].astype(jnp.float32) - t
        se = e * e
        if w is not None:
            se = se * w
        acc_c = acc_c + masked_rowsum(sel, se)

        if has_fine:
            ef = df_ref[sl, :].astype(jnp.float32) - t
            sef = ef * ef
            if w is not None:
                sef = sef * w
            acc_f = acc_f + masked_rowsum(sel, sef)

        acc_cnt = acc_cnt + jnp.sum(sel.astype(jnp.float32), axis=0, keepdims=True)
        acc_pos = acc_pos + jnp.sum(pos.astype(jnp.float32), axis=0, keepdims=True)
        return acc_c, acc_f, acc_cnt, acc_pos

    zero = jnp.zeros((1, LANE), jnp.float32)
    init = (zero, zero, zero, zero)
    if n_chunks == 1:
        acc_c, acc_f, acc_cnt, acc_pos = chunk_update(0, init)
    else:
        acc_c, acc_f, acc_cnt, acc_pos = lax.fori_loop(0, n_chunks, chunk_update, init)

    fused = jnp.concatenate(
        [acc_c, acc_f, acc_cnt, acc_pos, jnp.zeros((4, LANE), jnp.float32)], axis=0)
    out_ref[...] = fused[None]                    # one (1, 8, 128) unmasked store


def _to_rows(x, rows_p):
    """Flatten and view as (rows_p, LANE); only the small tail is zero-padded
    (zero targets are excluded by the positive-target mask)."""
    x = x.reshape(-1)
    pad = rows_p * LANE - x.shape[0]
    if pad:
        x = jnp.pad(x, (0, pad))
    return x.reshape(rows_p, LANE)


def _depth_loss_jnp(arrs, coef, instance_only, has_fine):
    """Plain-jnp path for small inputs (Pallas fixed overhead would dominate)."""
    it = iter(arrs)
    dc = next(it).reshape(-1).astype(jnp.float32)
    df = next(it).reshape(-1).astype(jnp.float32) if has_fine else None
    t = next(it).reshape(-1).astype(jnp.float32)
    vm = next(it).reshape(-1)
    pos = t > 0.0
    sel = pos & (vm != 0)
    w = None
    if instance_only:
        im = next(it).reshape(-1)
        iw = next(it).reshape(-1).astype(jnp.float32)
        sel = sel & (im != 0)
        w = iw
    cnt = jnp.sum(sel.astype(jnp.float32))
    pos_cnt = jnp.sum(pos.astype(jnp.float32))
    se = (dc - t) ** 2
    if w is not None:
        se = se * w
    loss = jnp.sum(jnp.where(sel, se, 0.0)) / cnt
    if has_fine:
        sef = (df - t) ** 2
        if w is not None:
            sef = sef * w
        loss = loss + jnp.sum(jnp.where(sel, sef, 0.0)) / cnt
    return coef * loss, cnt, pos_cnt


@functools.partial(
    jax.jit,
    static_argnames=("instance_only", "has_fine", "use_pallas",
                     "tm_cap_override", "chunk_override"))
def _depth_loss_device(dc, df, tgt, vm, im, iw, coef, *, instance_only, has_fine,
                       use_pallas=None, tm_cap_override=None, chunk_override=None):
    """Device-side loss. Returns (loss, selected_count, positive_target_count)."""
    arrays = [dc]
    if has_fine:
        arrays.append(df)
    arrays += [tgt, vm]
    if instance_only:
        arrays += [im, iw]

    # Floating inputs keep their dtype (bf16 stays bf16 -> half the HBM bytes,
    # upcast in-kernel).  Non-floating masks are normalized to int8 (the kernel
    # only ever tests != 0) -- never widened to f32.
    arrs = []
    for a in arrays:
        a = jnp.asarray(a)
        if not jnp.issubdtype(a.dtype, jnp.floating):
            a = (a != 0).astype(jnp.int8)
        arrs.append(a)

    total_bytes = sum(int(a.size) * jnp.dtype(a.dtype).itemsize for a in arrs)
    if use_pallas is None:
        use_pallas = total_bytes >= SMALL_INPUT_BYTES
    if not use_pallas:
        return _depth_loss_jnp(arrs, coef, instance_only, has_fine)

    n = int(arrs[0].size)
    rows = pl.cdiv(n, LANE)
    mult = max(_SUBLANE.get(jnp.dtype(a.dtype).itemsize, 8) for a in arrs)
    rows_p = pl.cdiv(rows, mult) * mult           # pad rows so no block exceeds the array

    tm_cap, prefer_split = _chip_config()
    chunk_cap = CHUNK
    if tm_cap_override is not None:
        tm_cap, prefer_split = tm_cap_override, False
    if chunk_override is not None:
        chunk_cap = chunk_override

    if rows_p <= chunk_cap:
        chunk = rows_p
        tm = rows_p
    else:
        chunk = chunk_cap
        tm = min(tm_cap, (rows_p // chunk) * chunk)
        if prefer_split and rows_p >= 2 * chunk:
            # v7x: keep >= 2 grid steps so both TensorCores stream HBM.
            tm = min(tm, pl.cdiv(rows_p, 2 * chunk) * chunk)
    n_chunks = tm // chunk
    grid = pl.cdiv(rows_p, tm)
    need_mask = (grid * tm) != rows_p             # only the last block can be partial

    mats = [_to_rows(a, rows_p) for a in arrs]

    # Explicit VMEM budget: double-buffered input windows + fused output block
    # + headroom for spilled in-kernel f32 temporaries (bounded by `chunk`).
    bytes_per_row = sum(LANE * jnp.dtype(a.dtype).itemsize for a in arrs)
    vmem_limit = 2 * tm * bytes_per_row
    vmem_limit += 2 * 8 * LANE * 4
    vmem_limit += 16 * chunk * LANE * 4
    vmem_limit = int(min(max(vmem_limit, 16 << 20), 52 << 20))  # < v7x 64 MiB physical

    kernel = functools.partial(_depth_loss_kernel, rows_p, chunk, n_chunks,
                               need_mask, instance_only, has_fine)
    partials = pl.pallas_call(
        kernel,
        out_shape=jax.ShapeDtypeStruct((grid, 8, LANE), jnp.float32),
        grid=(grid,),
        in_specs=[pl.BlockSpec((tm, LANE), lambda i: (i, 0))] * len(mats),
        out_specs=pl.BlockSpec((1, 8, LANE), lambda i: (i, 0, 0)),
        compiler_params=pltpu.CompilerParams(
            dimension_semantics=("parallel",),     # independent per-block partials
            vmem_limit_bytes=vmem_limit),
    )(*mats)

    # Single tiny finalize reduction.  Counts are f32: exact up to ~2^24 rays.
    sums = jnp.sum(partials, axis=(0, 2))          # (8,)
    sse_c, sse_f, cnt, pos_cnt = sums[0], sums[1], sums[2], sums[3]
    loss = sse_c / cnt
    if has_fine:
        loss = loss + sse_f / cnt
    return coef * loss, cnt, pos_cnt


def depth_loss_device(inputs, batch, coef=1.0, instance_only=False,
                      use_pallas=None, _tm_cap=None, _chunk=None):
    """No-host-sync API: returns device values (loss, count, positive_count).

    Inside a jitted training step, fold the module's early exits in-graph, e.g.
        loss = jnp.where((pos_cnt == 0) | (cnt == 0), 0.0, loss)
    """
    targets = batch["depths"]
    valid_mask = batch["valid_mask"]
    if instance_only:
        has_fine = "depth_instance_fine" in inputs
        dc = inputs["depth_instance_coarse"]
        df = inputs["depth_instance_fine"] if has_fine else None
        im = batch["instance_mask"]
        iw = batch["instance_mask_weight"]
    else:
        # Mirrors the PyTorch gating: presence of 'rgb_fine' implies 'depth_fine'.
        has_fine = "rgb_fine" in inputs
        dc = inputs["depth_coarse"]
        df = inputs["depth_fine"] if has_fine else None
        im = iw = None
    return _depth_loss_device(
        dc, df, targets, valid_mask, im, iw, jnp.float32(coef),
        instance_only=instance_only, has_fine=has_fine, use_pallas=use_pallas,
        tm_cap_override=_tm_cap, chunk_override=_chunk)


def depth_loss(inputs, batch, coef=1.0, instance_only=False,
               use_pallas=None, _tm_cap=None, _chunk=None):
    """Torch-compatible API (may return None, like DepthLoss.forward).

    Performs ONE small host readback of the two count scalars for the
    data-dependent early exits; prefer depth_loss_device in training loops.
    """
    loss, cnt, pos_cnt = depth_loss_device(
        inputs, batch, coef=coef, instance_only=instance_only,
        use_pallas=use_pallas, _tm_cap=_tm_cap, _chunk=_chunk)
    pos_h, cnt_h = jax.device_get((pos_cnt, cnt))
    if float(pos_h) == 0.0:
        return None
    if instance_only and float(cnt_h) == 0.0:
        return None
    # Non-instance mode with cnt==0 yields NaN, matching torch's empty .mean().
    return loss


def depth_loss_ref(inputs, batch, coef=1.0, instance_only=False):
    """Pure-JAX reference mirroring the PyTorch semantics (host float or None)."""
    t = jnp.asarray(batch["depths"], jnp.float32).reshape(-1)
    pos = (t > 0).astype(jnp.float32)
    if float(jnp.sum(pos)) == 0.0:
        return None
    m = jnp.asarray(batch["valid_mask"], jnp.float32).reshape(-1) * pos
    if instance_only:
        m = m * jnp.asarray(batch["instance_mask"], jnp.float32).reshape(-1)
        if float(jnp.sum(m)) == 0.0:
            return None
        w = jnp.asarray(batch["instance_mask_weight"], jnp.float32).reshape(-1)
        dc = jnp.asarray(inputs["depth_instance_coarse"], jnp.float32).reshape(-1)
        has_fine = "depth_instance_fine" in inputs
        df = jnp.asarray(inputs.get("depth_instance_fine", dc), jnp.float32).reshape(-1)
    else:
        w = jnp.ones_like(t)
        dc = jnp.asarray(inputs["depth_coarse"], jnp.float32).reshape(-1)
        has_fine = "rgb_fine" in inputs
        df = jnp.asarray(inputs.get("depth_fine", dc), jnp.float32).reshape(-1)
    cnt = jnp.sum(m)
    loss = jnp.sum(m * w * (dc - t) ** 2) / cnt
    if has_fine:
        loss = loss + jnp.sum(m * w * (df - t) ** 2) / cnt
    return coef * float(loss)


if __name__ == "__main__":
    key = jax.random.PRNGKey(0)
    kd, kv, kc, kf, ki, kw, k1, k2, k3 = jax.random.split(key, 9)

    B, R = 2, 1024          # batch of 2 images, 1024 rays each -> N = 2048
    N = B * R

    raw_depth = jax.random.uniform(kd, (B, R), minval=0.0, maxval=5.0)
    depths = jnp.where(raw_depth > 1.0, raw_depth, 0.0)          # some zeros
    valid_mask = (jax.random.uniform(kv, (B, R)) > 0.2).astype(jnp.float32)
    instance_mask = (jax.random.uniform(ki, (B, R)) > 0.5).astype(jnp.float32)
    instance_mask_weight = jax.random.uniform(kw, (B, R), minval=0.5, maxval=1.5)

    depth_coarse = jax.random.uniform(kc, (N,), minval=0.0, maxval=5.0)
    depth_fine = jax.random.uniform(kf, (N,), minval=0.0, maxval=5.0)

    batch = {
        "depths": depths,
        "valid_mask": valid_mask,
        "instance_mask": instance_mask,
        "instance_mask_weight": instance_mask_weight,
    }
    inputs = {
        "depth_coarse": depth_coarse,
        "depth_fine": depth_fine,
        "rgb_fine": jnp.zeros((N, 3), jnp.float32),  # presence gates fine term
        "depth_instance_coarse": depth_coarse,
        "depth_instance_fine": depth_fine,
    }

    # 1) default mode (coarse + fine), forced through the Pallas kernel
    out = depth_loss(inputs, batch, coef=1.0, instance_only=False, use_pallas=True)
    ref = depth_loss_ref(inputs, batch, coef=1.0, instance_only=False)
    assert out is not None and ref is not None
    np.testing.assert_allclose(np.asarray(out), ref, rtol=1e-4, atol=1e-6)

    # 2) instance_only mode (weighted, coarse + fine), forced Pallas
    out_i = depth_loss(inputs, batch, coef=2.0, instance_only=True, use_pallas=True)
    ref_i = depth_loss_ref(inputs, batch, coef=2.0, instance_only=True)
    assert out_i is not None and ref_i is not None
    np.testing.assert_allclose(np.asarray(out_i), ref_i, rtol=1e-4, atol=1e-6)

    # 3) no fine head, ray count NOT a multiple of 128, bool valid_mask
    #    (exercises the narrow int8 mask stream + sublane-32 tiling)
    N2 = 1000
    t2_raw = jax.random.uniform(k1, (N2,), minval=0.0, maxval=5.0)
    t2 = jnp.where(t2_raw > 1.5, t2_raw, 0.0)
    vm2 = jax.random.uniform(k2, (N2,)) > 0.1                    # bool mask
    dc2 = jax.random.uniform(k3, (N2,), minval=0.0, maxval=5.0)
    batch2 = {"depths": t2, "valid_mask": vm2}
    inputs2 = {"depth_coarse": dc2}
    out2 = depth_loss(inputs2, batch2, coef=0.5, instance_only=False, use_pallas=True)
    ref2 = depth_loss_ref(inputs2, batch2, coef=0.5, instance_only=False)
    assert out2 is not None and ref2 is not None
    np.testing.assert_allclose(np.asarray(out2), ref2, rtol=1e-4, atol=1e-6)

    # 4) multi-block + multi-chunk + partial-tail masking path, via small test
    #    overrides (f32-only inputs): rows_p=24, tm=16, chunk=8 -> grid=2,
    #    in-kernel fori_loop of 2 chunks, masked partial last block.
    N4 = 3000
    k4a, k4b, k4c = jax.random.split(k1, 3)
    t4_raw = jax.random.uniform(k4a, (N4,), minval=0.0, maxval=5.0)
    t4 = jnp.where(t4_raw > 1.0, t4_raw, 0.0)
    vm4 = (jax.random.uniform(k4b, (N4,)) > 0.2).astype(jnp.float32)
    dc4 = jax.random.uniform(k4c, (N4,), minval=0.0, maxval=5.0)
    batch4 = {"depths": t4, "valid_mask": vm4}
    inputs4 = {"depth_coarse": dc4}
    out4 = depth_loss(inputs4, batch4, coef=1.0, instance_only=False,
                      use_pallas=True, _tm_cap=16, _chunk=8)
    ref4 = depth_loss_ref(inputs4, batch4, coef=1.0, instance_only=False)
    assert out4 is not None and ref4 is not None
    np.testing.assert_allclose(np.asarray(out4), ref4, rtol=1e-4, atol=1e-6)

    # 5) small-N auto fallback (plain-jnp path) agrees with the Pallas path
    out5 = depth_loss(inputs, batch, coef=1.0, instance_only=False)  # auto
    np.testing.assert_allclose(np.asarray(out5), ref, rtol=1e-4, atol=1e-6)

    # 6) all-zero targets -> None early exit (mirrors the PyTorch module)
    batch6 = {"depths": jnp.zeros((B, R), jnp.float32), "valid_mask": valid_mask}
    assert depth_loss({"depth_coarse": depth_coarse}, batch6, use_pallas=True) is None

    # 7) no-host-sync API returns device values
    loss_d, cnt_d, pos_d = depth_loss_device(
        inputs, batch, coef=1.0, instance_only=False, use_pallas=True)
    jax.block_until_ready((loss_d, cnt_d, pos_d))

    jax.block_until_ready(out)
    print("KERNEL_OK")
</pallas_src>

<mosaic_0001>
module attributes {stable_mosaic.version = 11 : i64} {
  func.func @_depth_loss_kernel(%arg0: i32, %arg1: memref<16x128xf32, #tpu.memory_space<vmem>>, %arg2: memref<16x128xf32, #tpu.memory_space<vmem>>, %arg3: memref<16x128xf32, #tpu.memory_space<vmem>>, %arg4: memref<16x128xf32, #tpu.memory_space<vmem>>, %arg5: memref<1x8x128xf32, #tpu.memory_space<vmem>>) attributes {dimension_semantics = [#tpu.dimension_semantics<parallel>], iteration_bounds = array<i64: 1>, scalar_prefetch = 0 : i64, scratch_operands = 0 : i64, tpu.core_type = #tpu.core_type<tc>, window_params = [{transform_indices = @transform_0, window_bounds = array<i64: 16, 128>}, {transform_indices = @transform_1, window_bounds = array<i64: 16, 128>}, {transform_indices = @transform_2, window_bounds = array<i64: 16, 128>}, {transform_indices = @transform_3, window_bounds = array<i64: 16, 128>}, {transform_indices = @transform_4, window_bounds = array<i64: 1, 8, 128>}]} {
    %cst = arith.constant 0.000000e+00 : f32
    %0 = vector.broadcast %cst : f32 to vector<1x128xf32>
    %c0 = arith.constant 0 : index
    %c0_0 = arith.constant 0 : index
    %1 = vector.load %arg3[%c0, %c0_0] : memref<16x128xf32, #tpu.memory_space<vmem>>, vector<16x128xf32>
    %cst_1 = arith.constant 0.000000e+00 : f32
    %2 = vector.broadcast %cst_1 : f32 to vector<16x128xf32>
    %3 = arith.cmpf ogt, %1, %2 : vector<16x128xf32>
    %c0_2 = arith.constant 0 : index
    %c0_3 = arith.constant 0 : index
    %4 = vector.load %arg4[%c0_2, %c0_3] : memref<16x128xf32, #tpu.memory_space<vmem>>, vector<16x128xf32>
    %cst_4 = arith.constant 0.000000e+00 : f32
    %5 = vector.broadcast %cst_4 : f32 to vector<16x128xf32>
    %6 = arith.cmpf one, %4, %5 : vector<16x128xf32>
    %7 = arith.andi %3, %6 : vector<16x128xi1>
    %c0_5 = arith.constant 0 : index
    %c0_6 = arith.constant 0 : index
    %8 = vector.load %arg1[%c0_5, %c0_6] : memref<16x128xf32, #tpu.memory_space<vmem>>, vector<16x128xf32>
    %9 = arith.subf %8, %1 : vector<16x128xf32>
    %10 = arith.mulf %9, %9 : vector<16x128xf32>
    %cst_7 = arith.constant 0.000000e+00 : f32
    %11 = vector.broadcast %cst_7 : f32 to vector<16x128xf32>
    %12 = arith.select %7, %10, %11 : vector<16x128xi1>, vector<16x128xf32>
    %cst_8 = arith.constant dense<0.000000e+00> : vector<128xf32>
    %13 = vector.multi_reduction <add>, %12, %cst_8 [0] : vector<16x128xf32> to vector<128xf32>
    %14 = vector.shape_cast %13 : vector<128xf32> to vector<1x128xf32>
    %15 = arith.addf %0, %14 : vector<1x128xf32>
    %c0_9 = arith.constant 0 : index
    %c0_10 = arith.constant 0 : index
    %16 = vector.load %arg2[%c0_9, %c0_10] : memref<16x128xf32, #tpu.memory_space<vmem>>, vector<16x128xf32>
    %17 = arith.subf %16, %1 : vector<16x128xf32>
    %18 = arith.mulf %17, %17 : vector<16x128xf32>
    %cst_11 = arith.constant 0.000000e+00 : f32
    %19 = vector.broadcast %cst_11 : f32 to vector<16x128xf32>
    %20 = arith.select %7, %18, %19 : vector<16x128xi1>, vector<16x128xf32>
    %cst_12 = arith.constant dense<0.000000e+00> : vector<128xf32>
    %21 = vector.multi_reduction <add>, %20, %cst_12 [0] : vector<16x128xf32> to vector<128xf32>
    %22 = vector.shape_cast %21 : vector<128xf32> to vector<1x128xf32>
    %23 = arith.addf %0, %22 : vector<1x128xf32>
    %24 = arith.extui %7 : vector<16x128xi1> to vector<16x128xi32>
    %25 = arith.sitofp %24 : vector<16x128xi32> to vector<16x128xf32>
    %cst_13 = arith.constant dense<0.000000e+00> : vector<128xf32>
    %26 = vector.multi_reduction <add>, %25, %cst_13 [0] : vector<16x128xf32> to vector<128xf32>
    %27 = vector.shape_cast %26 : vector<128xf32> to vector<1x128xf32>
    %28 = arith.addf %0, %27 : vector<1x128xf32>
    %29 = arith.extui %3 : vector<16x128xi1> to vector<16x128xi32>
    %30 = arith.sitofp %29 : vector<16x128xi32> to vector<16x128xf32>
    %cst_14 = arith.constant dense<0.000000e+00> : vector<128xf32>
    %31 = vector.multi_reduction <add>, %30, %cst_14 [0] : vector<16x128xf32> to vector<128xf32>
    %32 = vector.shape_cast %31 : vector<128xf32> to vector<1x128xf32>
    %33 = arith.addf %0, %32 : vector<1x128xf32>
    %cst_15 = arith.constant 0.000000e+00 : f32
    %34 = vector.broadcast %cst_15 : f32 to vector<4x128xf32>
    %35 = tpu.concatenate %15, %23, %28, %33, %34 in 0 : vector<1x128xf32>, vector<1x128xf32>, vector<1x128xf32>, vector<1x128xf32>, vector<4x128xf32> -> vector<8x128xf32>
    %36 = vector.shape_cast %35 : vector<8x128xf32> to vector<1x8x128xf32>
    %c0_16 = arith.constant 0 : index
    %c0_17 = arith.constant 0 : index
    %c0_18 = arith.constant 0 : index
    %37 = vector.load %arg5[%c0_16, %c0_17, %c0_18] : memref<1x8x128xf32, #tpu.memory_space<vmem>>, vector<1x8x128xf32>
    tpu.vector_store %arg5[%c0_16, %c0_17, %c0_18], %36 {strides = array<i32>} : memref<1x8x128xf32, #tpu.memory_space<vmem>>, vector<1x8x128xf32>,
    return
  }
  func.func @transform_0(%arg0: i32) -> (i32, i32) {
    %c0_i32 = arith.constant 0 : i32
    %c0_i32_0 = arith.constant 0 : i32
    return %arg0, %c0_i32 : i32, i32
  }
  func.func @transform_1(%arg0: i32) -> (i32, i32) {
    %c0_i32 = arith.constant 0 : i32
    %c0_i32_0 = arith.constant 0 : i32
    return %arg0, %c0_i32 : i32, i32
  }
  func.func @transform_2(%arg0: i32) -> (i32, i32) {
    %c0_i32 = arith.constant 0 : i32
    %c0_i32_0 = arith.constant 0 : i32
    return %arg0, %c0_i32 : i32, i32
  }
  func.func @transform_3(%arg0: i32) -> (i32, i32) {
    %c0_i32 = arith.constant 0 : i32
    %c0_i32_0 = arith.constant 0 : i32
    return %arg0, %c0_i32 : i32, i32
  }
  func.func @transform_4(%arg0: i32) -> (i32, i32, i32) {
    %c0_i32 = arith.constant 0 : i32
    %c0_i32_0 = arith.constant 0 : i32
    %c0_i32_1 = arith.constant 0 : i32
    return %arg0, %c0_i32, %c0_i32_0 : i32, i32, i32
  }
}

</mosaic_0001>

<llo_original>
// kernel: _depth_loss_device.1
$region0: #{_depth_loss_device.1}
  #allocation0 [shape = 'u32[]', space=smem, size = 0x4, offset = 0x4, fixed_abs, tag = 'smem constant byte address 0x4 - core index']
  #allocation1 [shape = 'u32[144,128]{1,0:T(1,128)}', space=vmem, size = 0x12000, scoped, tag = 'internal scratch']
  %s0 = inlined_call_operand.vmem [shape: f32[16,128], index: 0, kind: input, shape index: {}]
  %s1 = inlined_call_operand.vmem [shape: f32[16,128], index: 1, kind: input, shape index: {}]
  %s2 = inlined_call_operand.vmem [shape: f32[16,128], index: 2, kind: input, shape index: {}]
  %s3 = inlined_call_operand.vmem [shape: f32[16,128], index: 3, kind: input, shape index: {}]
  %s4 = inlined_call_operand.vmem [shape: f32[1,8,128], index: 4, kind: output, shape index: {}]
  %s5 = sld [smem:[#allocation0]]
  $region26: #{_depth_loss_device.1} parent=0
    _
  %s7 = ssub.s32 1, %s5
  %s8 = scalar_select 0, %s7, %s5
  // Predicated region
  $region2: #{_depth_loss_device.1} parent=0 // pred_check
    _
  $region3: #{_depth_loss_device.1} parent=0 // pred_check_branch
    %10 = sbr.rel (0) target = $region5
  $region4: #{_depth_loss_device.1} parent=0 // pred_region
    _
  $region5: #{_depth_loss_device.1} parent=0 // pred_fallthru
    _
  // Predicated region
  $region6: #{_depth_loss_device.1} parent=0 // pred_check
    _
  $region7: #{_depth_loss_device.1} parent=0 // pred_check_branch
    %12 = sbr.rel (0) target = $region9
  $region8: #{_depth_loss_device.1} parent=0 // pred_region
    _
  $region9: #{_depth_loss_device.1} parent=0 // pred_fallthru
    _
  // Predicated region
  $region10: #{_depth_loss_device.1} parent=0 // pred_check
    _
  $region11: #{_depth_loss_device.1} parent=0 // pred_check_branch
    %14 = sbr.rel (0) target = $region13
  $region12: #{_depth_loss_device.1} parent=0 // pred_region
    _
  $region13: #{_depth_loss_device.1} parent=0 // pred_fallthru
    _
  // Predicated region
  $region14: #{_depth_loss_device.1} parent=0 // pred_check
    _
  $region15: #{_depth_loss_device.1} parent=0 // pred_check_branch
    %16 = sbr.rel (0) target = $region17
  $region16: #{_depth_loss_device.1} parent=0 // pred_region
    _
  $region17: #{_depth_loss_device.1} parent=0 // pred_fallthru
    _
  %v17 = vld [vmem:[%s2] sm:$0xff]
  %v18 = vld [vmem:[%s2 + $0x8] sm:$0xff]
  %vm19 = vcmp.gt.f32.partialorder %v17, 0.0
  %vm20 = vcmp.gt.f32.partialorder %v18, 0.0
  %v21 = vld [vmem:[%s3] sm:$0xff]
  %v22 = vld [vmem:[%s3 + $0x8] sm:$0xff]
  %vm23 = vcmp.ne.f32.partialorder %v21, 0.0
  %vm24 = vcmp.ne.f32.partialorder %v22, 0.0
  %vm25 = vmand %vm19, %vm23
  %vm26 = vmand %vm20, %vm24
  %v27 = vld [vmem:[%s0] sm:$0xff]
  %v28 = vld [vmem:[%s0 + $0x8] sm:$0xff]
  %v29 = vsub.f32 %v27, %v17
  %v30 = vsub.f32 %v28, %v18
  %v31 = vmul.f32 %v29, %v29
  %v32 = vmul.f32 %v30, %v30
  %v33 = vsel %vm25, %v31, 0.0
  %v34 = vsel %vm26, %v32, 0.0
  %v35 = vadd.f32 %v33, %v34
  %v36 = vrot.slane %v35, 4
  %v37 = vadd.f32 %v35, %v36
  %v38 = vrot.slane %v37, 2
  %v39 = vadd.f32 %v37, %v38
  %v40 = vrot.slane %v39, 1
  %v41 = vadd.f32 %v39, %v40
  %v42 = vadd.f32 %v41, 0.0
  %v43 = vld [vmem:[%s1] sm:$0xff]
  %v44 = vld [vmem:[%s1 + $0x8] sm:$0xff]
  %v45 = vsub.f32 %v43, %v17
  %v46 = vsub.f32 %v44, %v18
  %v47 = vmul.f32 %v45, %v45
  %v48 = vmul.f32 %v46, %v46
  %v49 = vsel %vm25, %v47, 0.0
  %v50 = vsel %vm26, %v48, 0.0
  %v51 = vadd.f32 %v49, %v50
  %v52 = vrot.slane %v51, 4
  %v53 = vadd.f32 %v51, %v52
  %v54 = vrot.slane %v53, 2
  %v55 = vadd.f32 %v53, %v54
  %v56 = vrot.slane %v55, 1
  %v57 = vadd.f32 %v55, %v56
  %v58 = vadd.f32 %v57, 0.0
  %v59 = vsel %vm25, 1, 0
  %v60 = vsel %vm26, 1, 0
  %v61 = vcvt.s32.f32 %v59
  %v62 = vcvt.s32.f32 %v60
  %v63 = vadd.f32 %v61, %v62
  %v64 = vrot.slane %v63, 4
  %v65 = vadd.f32 %v63, %v64
  %v66 = vrot.slane %v65, 2
  %v67 = vadd.f32 %v65, %v66
  %v68 = vrot.slane %v67, 1
  %v69 = vadd.f32 %v67, %v68
  %v70 = vadd.f32 %v69, 0.0
  %v71 = vsel %vm19, 1, 0
  %v72 = vsel %vm20, 1, 0
  %v73 = vcvt.s32.f32 %v71
  %v74 = vcvt.s32.f32 %v72
  %v75 = vadd.f32 %v73, %v74
  %v76 = vrot.slane %v75, 4
  %v77 = vadd.f32 %v75, %v76
  %v78 = vrot.slane %v77, 2
  %v79 = vadd.f32 %v77, %v78
  %v80 = vrot.slane %v79, 1
  %v81 = vadd.f32 %v79, %v80
  %v82 = vadd.f32 %v81, 0.0
  %vm83 = vcmask 1040384
  %v84 = vsel %vm83, %v42, %v58
  %vm85 = vcmask 1041408
  %v86 = vsel %vm85, %v84, %v70
  %vm87 = vcmask 1042432
  %v88 = vsel %vm87, %v86, %v82
  %vm89 = vcmask 1043456
  %v90 = vsel %vm89, %v88, 0.0
  %91 = vst [vmem:[%s4] sm:$0xff] %v90
  // Predicated region
  $region18: #{_depth_loss_device.1} parent=0 // pred_check
    _
  $region19: #{_depth_loss_device.1} parent=0 // pred_check_branch
    %93 = sbr.rel (0) target = $region21
  $region20: #{_depth_loss_device.1} parent=0 // pred_region
    _
  $region21: #{_depth_loss_device.1} parent=0 // pred_fallthru
    _
  // Predicated region
  $region22: #{_depth_loss_device.1} parent=0 // pred_check
    _
  $region23: #{_depth_loss_device.1} parent=0 // pred_check_branch
    %95 = sbr.rel (0) target = $region25
  $region24: #{_depth_loss_device.1} parent=0 // pred_region
    _
  $region25: #{_depth_loss_device.1} parent=0 // pred_fallthru
    _

</llo_original>
